<compile_context>
chip_gen: v7x
topology: tpu7x:2x2x1
jax: 0.10.0
libtpu: 0.0.40
codegen_flags: <defaults>
</compile_context>

<pallas_src>
import jax
import jax.numpy as jnp
from jax.experimental import pallas as pl
from jax.experimental.pallas import tpu as pltpu


def _point_loss_kernel(pred_ref,   # VMEM (P, Qpad)  f32  lane-dense pred points (one batch)
                       tgt_ref,    # VMEM (P, Tpad)  f32  matched+masked target points (one batch)
                       idx_ref,    # VMEM (1, Tpad)  i32  src (query) index per target slot, -1 = invalid
                       out_ref):   # VMEM (1, 1)     f32  per-batch unscaled masked-L1 sum
    pred = pred_ref[...]           # (P, Qpad)
    tgt = tgt_ref[...]             # (P, Tpad)
    gsrc = idx_ref[...]            # (1, Tpad) i32

    Qpad = pred.shape[1]
    Tpad = tgt.shape[1]

    # One-hot gather of the matched prediction for each target slot.
    # Invalid / padded slots carry index -1 -> all-zero column -> |0 - 0| = 0.
    q_iota = jax.lax.broadcasted_iota(jnp.int32, (Qpad, Tpad), 0)
    sel_src = (q_iota == gsrc).astype(jnp.float32)           # (Qpad, Tpad)

    # Lane-dense gathered predictions: (P, Tpad), targets on the lane axis.
    out_point = jnp.dot(pred, sel_src, preferred_element_type=jnp.float32)

    # F.l1_loss(..., reduction='none') summed over matched pairs of this batch.
    l1 = jnp.abs(out_point - tgt)
    out_ref[...] = jnp.sum(l1, keepdims=True)                # (1, 1)


def point_criterion_loss(pred_points, key_points, src_idx, tgt_idx, mask,
                         num_boxes, loss_point_weight):
    """Scalar loss_point = sum_b sum_t mask * |pred[b, src] - key[b, tgt]| / num_boxes * w."""
    B, Q, P = pred_points.shape
    Tmax = key_points.shape[1]
    LANE = 128
    Qpad = ((Q + LANE - 1) // LANE) * LANE
    Tpad = ((Tmax + LANE - 1) // LANE) * LANE

    # --- wrapper-side index composition (removes the in-kernel target one-hot) ---
    tgt_gathered = jnp.take_along_axis(
        key_points, tgt_idx[..., None].astype(jnp.int32), axis=1)        # (B, Tmax, P)
    tgt_gathered = tgt_gathered * mask[..., None]                        # padded slots -> 0

    # --- lane-dense, 128-padded layouts (point dim on sublanes, rows on lanes) ---
    pred_lanes = jnp.transpose(pred_points, (0, 2, 1))                   # (B, P, Q)
    tgt_lanes = jnp.transpose(tgt_gathered, (0, 2, 1))                   # (B, P, Tmax)
    pred_lanes = jnp.pad(pred_lanes, ((0, 0), (0, 0), (0, Qpad - Q)))    # (B, P, Qpad)
    tgt_lanes = jnp.pad(tgt_lanes, ((0, 0), (0, 0), (0, Tpad - Tmax)))   # (B, P, Tpad)

    # Source (query) index per target slot; -1 sentinel for invalid / padding.
    valid = mask > 0
    src = jnp.where(valid, src_idx.astype(jnp.int32), -1)                # (B, Tmax)
    src = jnp.pad(src, ((0, 0), (0, Tpad - Tmax)), constant_values=-1)
    src = src[:, None, :]                                                # (B, 1, Tpad)

    per_batch = pl.pallas_call(
        _point_loss_kernel,
        out_shape=jax.ShapeDtypeStruct((B, 1, 1), jnp.float32),
        grid=(B,),
        in_specs=[
            pl.BlockSpec((None, P, Qpad), lambda b: (b, 0, 0)),   # pred_lanes
            pl.BlockSpec((None, P, Tpad), lambda b: (b, 0, 0)),   # tgt_lanes
            pl.BlockSpec((None, 1, Tpad), lambda b: (b, 0, 0)),   # src indices
        ],
        out_specs=pl.BlockSpec((None, 1, 1), lambda b: (b, 0, 0)),
        compiler_params=pltpu.CompilerParams(
            dimension_semantics=("parallel",)),
    )(pred_lanes, tgt_lanes, src)

    # num_boxes / loss weight are host scalars: scale outside the kernel.
    return jnp.sum(per_batch) / num_boxes * loss_point_weight


def simple_l1_matcher(pred_points, key_points, counts):
    """Plain-JAX stand-in for the external Hungarian matcher.

    For every (padded) target t in batch b, pick src_idx = argmin_q L1(pred[b,q], key[b,t]).
    tgt_idx is the identity permutation; invalid (padded) targets are masked out.
    """
    B, Q, P = pred_points.shape
    Tmax = key_points.shape[1]
    cost = jnp.abs(pred_points[:, :, None, :] - key_points[:, None, :, :]).sum(-1)  # (B,Q,Tmax)
    src_idx = jnp.argmin(cost, axis=1).astype(jnp.int32)                             # (B,Tmax)
    tgt_idx = jnp.broadcast_to(jnp.arange(Tmax, dtype=jnp.int32)[None, :], (B, Tmax))
    mask = (jnp.arange(Tmax)[None, :] < counts[:, None]).astype(jnp.float32)         # (B,Tmax)
    return src_idx, tgt_idx, mask


def reference_loss(pred_points, key_points, src_idx, tgt_idx, mask,
                   num_boxes, loss_point_weight):
    sel_pred = jnp.take_along_axis(pred_points, src_idx[..., None], axis=1)
    sel_tgt = jnp.take_along_axis(key_points, tgt_idx[..., None], axis=1)
    l1 = jnp.abs(sel_pred - sel_tgt) * mask[..., None]
    return l1.sum() / num_boxes * loss_point_weight


if __name__ == "__main__":
    key = jax.random.PRNGKey(0)
    B, Q, P, Tmax = 2, 8, 2, 5
    counts = jnp.array([3, 5], dtype=jnp.int32)    # per-image number of key_points
    weight_dict = {"loss_point": 5.0}

    k1, k2 = jax.random.split(key)
    pred_points = jax.random.uniform(k1, (B, Q, P), dtype=jnp.float32)        # outputs['pred_points']
    key_points = jax.random.uniform(k2, (B, Tmax, P), dtype=jnp.float32)      # targets[b]['key_points'] (padded)

    # forward(): indices = matcher(outputs, targets)
    src_idx, tgt_idx, mask = simple_l1_matcher(pred_points, key_points, counts)

    # num_boxes = clamp(sum(len(t['key_points'])), min=1)
    num_boxes = float(max(int(counts.sum()), 1))

    loss = point_criterion_loss(pred_points, key_points, src_idx, tgt_idx, mask,
                                num_boxes, weight_dict["loss_point"])
    loss = jax.block_until_ready(loss)

    ref = reference_loss(pred_points, key_points, src_idx, tgt_idx, mask,
                         num_boxes, weight_dict["loss_point"])
    ref = jax.block_until_ready(ref)

    assert jnp.allclose(loss, ref, rtol=1e-5, atol=1e-5), (loss, ref)
    print("KERNEL_OK")
</pallas_src>

<mosaic_0001>
module attributes {stable_mosaic.version = 11 : i64} {
  func.func @_point_loss_kernel(%arg0: i32, %arg1: memref<1x2x128xf32, #tpu.memory_space<vmem>>, %arg2: memref<1x2x128xf32, #tpu.memory_space<vmem>>, %arg3: memref<1x1x128xi32, #tpu.memory_space<vmem>>, %arg4: memref<1x1x1xf32, #tpu.memory_space<vmem>>) attributes {dimension_semantics = [#tpu.dimension_semantics<parallel>], iteration_bounds = array<i64: 2>, scalar_prefetch = 0 : i64, scratch_operands = 0 : i64, tpu.core_type = #tpu.core_type<tc>, window_params = [{transform_indices = @transform_0, window_bounds = array<i64: 1, 2, 128>}, {transform_indices = @transform_1, window_bounds = array<i64: 1, 2, 128>}, {transform_indices = @transform_2, window_bounds = array<i64: 1, 1, 128>}, {transform_indices = @transform_3, window_bounds = array<i64: 1, 1, 1>}]} {
    %c0 = arith.constant 0 : index
    %c0_0 = arith.constant 0 : index
    %c0_1 = arith.constant 0 : index
    %0 = vector.load %arg1[%c0, %c0_0, %c0_1] : memref<1x2x128xf32, #tpu.memory_space<vmem>>, vector<1x2x128xf32>
    %1 = vector.shape_cast %0 : vector<1x2x128xf32> to vector<2x128xf32>
    %c0_2 = arith.constant 0 : index
    %c0_3 = arith.constant 0 : index
    %c0_4 = arith.constant 0 : index
    %2 = vector.load %arg2[%c0_2, %c0_3, %c0_4] : memref<1x2x128xf32, #tpu.memory_space<vmem>>, vector<1x2x128xf32>
    %3 = vector.shape_cast %2 : vector<1x2x128xf32> to vector<2x128xf32>
    %c0_5 = arith.constant 0 : index
    %c0_6 = arith.constant 0 : index
    %c0_7 = arith.constant 0 : index
    %4 = vector.load %arg3[%c0_5, %c0_6, %c0_7] : memref<1x1x128xi32, #tpu.memory_space<vmem>>, vector<1x1x128xi32>
    %5 = vector.shape_cast %4 : vector<1x1x128xi32> to vector<1x128xi32>
    %6 = tpu.iota {dimensions = array<i32: 0>} : vector<128x128xi32>
    %7 = vector.broadcast %5 : vector<1x128xi32> to vector<128x128xi32>
    %8 = arith.cmpi eq, %6, %7 : vector<128x128xi32>
    %9 = arith.extui %8 : vector<128x128xi1> to vector<128x128xi32>
    %10 = arith.sitofp %9 : vector<128x128xi32> to vector<128x128xf32>
    %cst = arith.constant dense<0.000000e+00> : vector<2x128xf32>
    %11 = tpu.matmul %1, %10, %cst {dimension_numbers = #tpu.dot_dimension_numbers<[1], [0], [0], [1], [0, 0, 1, 1], [], []>} : vector<2x128xf32>, vector<128x128xf32>, vector<2x128xf32> -> vector<2x128xf32>
    %12 = arith.subf %11, %3 : vector<2x128xf32>
    %13 = math.absf %12 : vector<2x128xf32>
    %14 = vector.shape_cast %13 : vector<2x128xf32> to vector<1x2x128xf32>
    %cst_8 = arith.constant dense<0.000000e+00> : vector<1xf32>
    %15 = vector.multi_reduction <add>, %14, %cst_8 [1, 2] : vector<1x2x128xf32> to vector<1xf32>
    %16 = vector.shape_cast %15 : vector<1xf32> to vector<1x1x1xf32>
    %17 = vector.extract %16[0, 0, 0] : f32 from vector<1x1x1xf32>
    %18 = vector.broadcast %17 : f32 to vector<1x1xf32>
    %c0_9 = arith.constant 0 : index
    %c0_10 = arith.constant 0 : index
    %c0_11 = arith.constant 0 : index
    %19 = vector.load %arg4[%c0_9, %c0_10, %c0_11] : memref<1x1x1xf32, #tpu.memory_space<vmem>>, vector<1x1x1xf32>
    %20 = vector.shape_cast %19 : vector<1x1x1xf32> to vector<1x1xf32>
    %21 = vector.shape_cast %18 : vector<1x1xf32> to vector<1x1x1xf32>
    tpu.vector_store %arg4[%c0_9, %c0_10, %c0_11], %21 {strides = array<i32>} : memref<1x1x1xf32, #tpu.memory_space<vmem>>, vector<1x1x1xf32>,
    return
  }
  func.func @transform_0(%arg0: i32) -> (i32, i32, i32) {
    %c0_i32 = arith.constant 0 : i32
    %c0_i32_0 = arith.constant 0 : i32
    %c0_i32_1 = arith.constant 0 : i32
    return %arg0, %c0_i32, %c0_i32_0 : i32, i32, i32
  }
  func.func @transform_1(%arg0: i32) -> (i32, i32, i32) {
    %c0_i32 = arith.constant 0 : i32
    %c0_i32_0 = arith.constant 0 : i32
    %c0_i32_1 = arith.constant 0 : i32
    return %arg0, %c0_i32, %c0_i32_0 : i32, i32, i32
  }
  func.func @transform_2(%arg0: i32) -> (i32, i32, i32) {
    %c0_i32 = arith.constant 0 : i32
    %c0_i32_0 = arith.constant 0 : i32
    %c0_i32_1 = arith.constant 0 : i32
    return %arg0, %c0_i32, %c0_i32_0 : i32, i32, i32
  }
  func.func @transform_3(%arg0: i32) -> (i32, i32, i32) {
    %c0_i32 = arith.constant 0 : i32
    %c0_i32_0 = arith.constant 0 : i32
    %c0_i32_1 = arith.constant 0 : i32
    return %arg0, %c0_i32, %c0_i32_0 : i32, i32, i32
  }
}

</mosaic_0001>

<llo_original>
// kernel: tpu_custom_call.1
$region0: #{tpu_custom_call.1}
  #allocation0 [shape = 'u32[]', space=smem, size = 0x4, offset = 0x4, fixed_abs, tag = 'smem constant byte address 0x4 - core index']
  #allocation1 [shape = 'u32[144,128]{1,0:T(1,128)}', space=vmem, size = 0x12000, scoped, tag = 'internal scratch']
  %s0 = inlined_call_operand.hbm [shape: f32[2,2,128], index: 0, kind: input, shape index: {}]
  %s1 = inlined_call_operand.hbm [shape: f32[2,2,128], index: 1, kind: input, shape index: {}]
  %s2 = inlined_call_operand.vmem [shape: s32[2,1,128], index: 2, kind: input, shape index: {}]
  %s3 = inlined_call_operand.vmem [shape: f32[2,1,1], index: 3, kind: output, shape index: {}]
  %s4 = sld [smem:[#allocation0]]
  $region53: #{tpu_custom_call.1} parent=0
    _
  %s6 = ssub.s32 1, %s4
  %s7 = scalar_select 0, %s6, %s4
  $region1: #{tpu_custom_call.1} parent=0
    #allocation2 [shape = 'u8[2048]{0}', space=vmem, size = 0x800, scoped, tag = 'input window, operand 0']
    #allocation3 [shape = 's32[2]{0}', space=sflag, size = 0x8, scoped, tag = 'scoped memory for tpu_custom_call.1']
    #allocation4 [shape = 'u8[2048]{0}', space=vmem, size = 0x800, scoped, tag = 'input window, operand 1']
    #allocation5 [shape = 's32[2]{0}', space=sflag, size = 0x8, scoped, tag = 'scoped memory for tpu_custom_call.1']
    %8 = vsyncpa [#allocation3], 0
    %s9 = scalar_lea.sflag [#allocation3], 1
    %10 = vsyncpa %s9, 0
    %11 = vsyncpa [#allocation5], 0
    %s12 = scalar_lea.sflag [#allocation5], 1
    %13 = vsyncpa %s12, 0
    loop: start=0, step=1, limit=4
    $region2: #{tpu_custom_call.1} parent=1 // loop_pre_header
      _
    $region3: #{tpu_custom_call.1} parent=1 // loop_header
      %s15 = sphi 0, %s19
      %p16 = scmp.ge.s32.totalorder %s15, 4
      %s25 = sphi 0, %s27
      %s28 = sphi 0, %s25
      %s29 = sphi 0, %s28
      %s45 = sphi 0, %s29
      %s51 = sphi 0, %s53
      %s54 = sphi 0, %s51
      %s55 = sphi 0, %s54
      %s71 = sphi 0, %s55
      %s77 = sphi 0, %s79
      %s80 = sphi 0, %s77
      %s81 = sphi 0, %s80
      %s97 = sphi 0, %s81
      %s103 = sphi 0, %s105
      %s106 = sphi 0, %s103
      %s107 = sphi 0, %s106
      %s123 = sphi 0, %s107
    $region4: #{tpu_custom_call.1} parent=1 // loop_header_branch
      %18 = sbr.rel (%p16) target = $region8
    $region5: #{tpu_custom_call.1} parent=1 // loop_body
      %s20 = ssub.s32 %s15, 1
      %s21 = ssub.s32 %s15, 2
      %s22 = sadd.s32 %s15, 1
      %s23 = ssub.s32 %s15, %s22
      %p24 = scmp.eq.s32.totalorder %s23, 0
      %s26 = sadd.s32 %s25, 1
      %s27 = scalar_select %p24, %s25, %s26
      %p30 = pneg %p24
      %p31 = scmp.eq.s32.totalorder %s15, 1
      %p32 = por %p30, %p31
      %p33 = scmp.ne.s32.totalorder %s25, %s28
      %p34 = scmp.eq.s32.totalorder %s15, 0
      %p35 = por %p33, %p34
      %p36 = scmp.ne.s32.totalorder %s25, %s28
      %p37 = scmp.eq.s32.totalorder %s20, 1
      %p38 = por %p36, %p37
      %p39 = scmp.ne.s32.totalorder %s28, %s29
      %p40 = scmp.eq.s32.totalorder %s20, 0
      %p41 = por %p39, %p40
      %p42 = scmp.ne.s32.totalorder %s28, %s29
      %p43 = scmp.eq.s32.totalorder %s21, 1
      %p44 = por %p42, %p43
      %p46 = scmp.ne.s32.totalorder %s29, %s45
      %p47 = scmp.eq.s32.totalorder %s21, 0
      %p48 = por %p46, %p47
      %s49 = ssub.s32 %s15, %s22
      %p50 = scmp.eq.s32.totalorder %s49, 0
      %s52 = sadd.s32 %s51, 1
      %s53 = scalar_select %p50, %s51, %s52
      %p56 = pneg %p50
      %p57 = scmp.eq.s32.totalorder %s15, 1
      %p58 = por %p56, %p57
      %p59 = scmp.ne.s32.totalorder %s51, %s54
      %p60 = scmp.eq.s32.totalorder %s15, 0
      %p61 = por %p59, %p60
      %p62 = scmp.ne.s32.totalorder %s51, %s54
      %p63 = scmp.eq.s32.totalorder %s20, 1
      %p64 = por %p62, %p63
      %p65 = scmp.ne.s32.totalorder %s54, %s55
      %p66 = scmp.eq.s32.totalorder %s20, 0
      %p67 = por %p65, %p66
      %p68 = scmp.ne.s32.totalorder %s54, %s55
      %p69 = scmp.eq.s32.totalorder %s21, 1
      %p70 = por %p68, %p69
      %p72 = scmp.ne.s32.totalorder %s55, %s71
      %p73 = scmp.eq.s32.totalorder %s21, 0
      %p74 = por %p72, %p73
      %s75 = ssub.s32 %s15, %s22
      %p76 = scmp.eq.s32.totalorder %s75, 0
      %s78 = sadd.s32 %s77, 1
      %s79 = scalar_select %p76, %s77, %s78
      %p82 = pneg %p76
      %p83 = scmp.eq.s32.totalorder %s15, 1
      %p84 = por %p82, %p83
      %p85 = scmp.ne.s32.totalorder %s77, %s80
      %p86 = scmp.eq.s32.totalorder %s15, 0
      %p87 = por %p85, %p86
      %p88 = scmp.ne.s32.totalorder %s77, %s80
      %p89 = scmp.eq.s32.totalorder %s20, 1
      %p90 = por %p88, %p89
      %p91 = scmp.ne.s32.totalorder %s80, %s81
      %p92 = scmp.eq.s32.totalorder %s20, 0
      %p93 = por %p91, %p92
      %p94 = scmp.ne.s32.totalorder %s80, %s81
      %p95 = scmp.eq.s32.totalorder %s21, 1
      %p96 = por %p94, %p95
      %p98 = scmp.ne.s32.totalorder %s81, %s97
      %p99 = scmp.eq.s32.totalorder %s21, 0
      %p100 = por %p98, %p99
      %s101 = ssub.s32 %s15, %s22
      %p102 = scmp.eq.s32.totalorder %s101, 0
      %s104 = sadd.s32 %s103, 1
      %s105 = scalar_select %p102, %s103, %s104
      %p108 = pneg %p102
      %p109 = scmp.eq.s32.totalorder %s15, 1
      %p110 = por %p108, %p109
      %p111 = scmp.ne.s32.totalorder %s103, %s106
      %p112 = scmp.eq.s32.totalorder %s15, 0
      %p113 = por %p111, %p112
      %p114 = scmp.ne.s32.totalorder %s103, %s106
      %p115 = scmp.eq.s32.totalorder %s20, 1
      %p116 = por %p114, %p115
      %p117 = scmp.ne.s32.totalorder %s106, %s107
      %p118 = scmp.eq.s32.totalorder %s20, 0
      %p119 = por %p117, %p118
      %p120 = scmp.ne.s32.totalorder %s106, %s107
      %p121 = scmp.eq.s32.totalorder %s21, 1
      %p122 = por %p120, %p121
      %p124 = scmp.ne.s32.totalorder %s107, %s123
      %p125 = scmp.eq.s32.totalorder %s21, 0
      %p126 = por %p124, %p125
      %p127 = scmp.le.s32.totalorder 1, %s15
      %p128 = scmp.lt.s32.totalorder %s15, 3
      %p129 = pnand %p127, %p128
      %p130 = pneg %p129
      // Predicated region
      $region9: #{tpu_custom_call.1} parent=5 // pred_check
        _
      $region10: #{tpu_custom_call.1} parent=5 // pred_check_branch
        %132 = sbr.rel (%p129) target = $region12
      $region11: #{tpu_custom_call.1} parent=5 // pred_region
        %s133 = ssub.s32 %s15, 1
      $region12: #{tpu_custom_call.1} parent=5 // pred_fallthru
        _
      %p134 = scmp.lt.s32.totalorder %s15, 2
      // Predicated region
      $region13: #{tpu_custom_call.1} parent=5 // pred_check
        %p135 = pneg %p134
      $region14: #{tpu_custom_call.1} parent=5 // pred_check_branch
        %137 = sbr.rel (%p135) target = $region16
      $region15: #{tpu_custom_call.1} parent=5 // pred_region
        // Predicated region
        $region17: #{tpu_custom_call.1} parent=15 // pred_check
          %p138 = pneg %p35
        $region18: #{tpu_custom_call.1} parent=15 // pred_check_branch
          %140 = sbr.rel (%p138) target = $region20
        $region19: #{tpu_custom_call.1} parent=15 // pred_region
          %s141 = sand.u32 %s25, 1
          %s142 = scalar_lea.sflag [#allocation3], %s141
          %s143 = sand.u32 %s25, 1
          %s144 = smul.addr %s143, 2
          %s145 = scalar_lea.vmem [#allocation2], %s144
          %s147 = ssub.s32 32, 32
          %148 = vsyncadd %s142, %s147
          %s149 = smul.addr %s15, 32
          %s150 = scalar_lea.hbm %s0, %s149
          %s152 = sshll.u32 %s145, 4
          %s153 = int_to_ptr.vmem [resolvable:$true] %s152
          %155 = dma.hbm_to_vmem [thread:$0]  %s150, 32, %s153, %s142
        $region20: #{tpu_custom_call.1} parent=15 // pred_fallthru
          _
        // Predicated region
        $region21: #{tpu_custom_call.1} parent=15 // pred_check
          %p156 = pneg %p61
        $region22: #{tpu_custom_call.1} parent=15 // pred_check_branch
          %158 = sbr.rel (%p156) target = $region24
        $region23: #{tpu_custom_call.1} parent=15 // pred_region
          %s159 = sand.u32 %s51, 1
          %s160 = scalar_lea.sflag [#allocation5], %s159
          %s161 = sand.u32 %s51, 1
          %s162 = smul.addr %s161, 2
          %s163 = scalar_lea.vmem [#allocation4], %s162
          %s165 = ssub.s32 32, 32
          %166 = vsyncadd %s160, %s165
          %s167 = smul.addr %s15, 32
          %s168 = scalar_lea.hbm %s1, %s167
          %s170 = sshll.u32 %s163, 4
          %s171 = int_to_ptr.vmem [resolvable:$true] %s170
          %173 = dma.hbm_to_vmem [thread:$0]  %s168, 32, %s171, %s160
        $region24: #{tpu_custom_call.1} parent=15 // pred_fallthru
          _
        // Predicated region
        $region25: #{tpu_custom_call.1} parent=15 // pred_check
          %p174 = pneg %p87
        $region26: #{tpu_custom_call.1} parent=15 // pred_check_branch
          %176 = sbr.rel (%p174) target = $region28
        $region27: #{tpu_custom_call.1} parent=15 // pred_region
          %p177 = scmp.lt.s32.totalorder %s15, 1
          %s178 = scalar_select %p177, %s15, 1
          %s179 = scalar_lea.vmem %s2, %s178
        $region28: #{tpu_custom_call.1} parent=15 // pred_fallthru
          _
      $region16: #{tpu_custom_call.1} parent=5 // pred_fallthru
        _
      %p180 = scmp.le.s32.totalorder 1, %s15
      %p181 = scmp.lt.s32.totalorder %s15, 3
      %p182 = pnand %p180, %p181
      %p183 = pneg %p182
      // Predicated region
      $region29: #{tpu_custom_call.1} parent=5 // pred_check
        _
      $region30: #{tpu_custom_call.1} parent=5 // pred_check_branch
        %185 = sbr.rel (%p182) target = $region32
      $region31: #{tpu_custom_call.1} parent=5 // pred_region
        %s186 = ssub.s32 %s15, 1
        %s187 = sand.u32 %s28, 1
        %s188 = scalar_lea.sflag [#allocation3], %s187
        %s189 = sand.u32 %s28, 1
        %s190 = smul.addr %s189, 2
        %s191 = scalar_lea.vmem [#allocation2], %s190
        // Predicated region
        $region33: #{tpu_custom_call.1} parent=31 // pred_check
          %p192 = pneg %p41
        $region34: #{tpu_custom_call.1} parent=31 // pred_check_branch
          %194 = sbr.rel (%p192) target = $region36
        $region35: #{tpu_custom_call.1} parent=31 // pred_region
          %195 = dma.done %s188, 32
        $region36: #{tpu_custom_call.1} parent=31 // pred_fallthru
          _
        %s196 = sand.u32 %s54, 1
        %s197 = scalar_lea.sflag [#allocation5], %s196
        %s198 = sand.u32 %s54, 1
        %s199 = smul.addr %s198, 2
        %s200 = scalar_lea.vmem [#allocation4], %s199
        // Predicated region
        $region37: #{tpu_custom_call.1} parent=31 // pred_check
          %p201 = pneg %p67
        $region38: #{tpu_custom_call.1} parent=31 // pred_check_branch
          %203 = sbr.rel (%p201) target = $region40
        $region39: #{tpu_custom_call.1} parent=31 // pred_region
          %204 = dma.done %s197, 32
        $region40: #{tpu_custom_call.1} parent=31 // pred_fallthru
          _
        %s205 = sand.u32 %s28, 1
        %s206 = scalar_lea.sflag [#allocation3], %s205
        %s207 = sand.u32 %s28, 1
        %s208 = smul.addr %s207, 2
        %s209 = scalar_lea.vmem [#allocation2], %s208
        %p210 = pneg %p41
        %p211 = pneg %p38
        %s212 = sand.u32 %s54, 1
        %s213 = scalar_lea.sflag [#allocation5], %s212
        %s214 = sand.u32 %s54, 1
        %s215 = smul.addr %s214, 2
        %s216 = scalar_lea.vmem [#allocation4], %s215
        %p217 = pneg %p67
        %p218 = pneg %p64
        %p219 = scmp.lt.s32.totalorder %s20, 1
        %s220 = scalar_select %p219, %s20, 1
        %s221 = scalar_lea.vmem %s2, %s220
        %p222 = pneg %p93
        %p223 = pneg %p90
        %p224 = pneg %p119
        %p225 = pneg %p116
        %p226 = scmp.lt.s32.totalorder %s20, 1
        %s227 = scalar_select %p226, %s20, 1
        %s228 = scalar_lea.vmem %s3, %s227
        %p229 = scmp.lt.s32.totalorder %s20, 1
        %s230 = scalar_select %p229, %s20, 1
        %s231 = scalar_lea.vmem %s2, %s230
        %p232 = scmp.lt.s32.totalorder %s20, 1
        %s233 = scalar_select %p232, %s20, 1
        %s234 = scalar_lea.vmem %s3, %s233
        %v235 = vld [vmem:[%s191] sm:$0x3]
        %v236 = vld [vmem:[%s200] sm:$0x3]
        %v237 = vld [vmem:[%s231] sm:$0x1]
        %v238 = vlaneseq
        %v239 = vshrl.u32 %v238, 7
        %v240 = vadd.s32 %v239, 8
        %v241 = vadd.s32 %v239, 16
        %v242 = vadd.s32 %v239, 24
        %v243 = vadd.s32 %v239, 32
        %v244 = vadd.s32 %v239, 40
        %v245 = vadd.s32 %v239, 48
        %v246 = vadd.s32 %v239, 56
        %v247 = vadd.s32 %v239, 64
        %v248 = vadd.s32 %v239, 72
        %v249 = vadd.s32 %v239, 80
        %v250 = vadd.s32 %v239, 88
        %v251 = vadd.s32 %v239, 96
        %v252 = vadd.s32 %v239, 104
        %v253 = vadd.s32 %v239, 112
        %v254 = vadd.s32 %v239, 120
        %v255 = vlaneseq
        %v256 = vshrl.u32 %v255, 7
        %v257 = vsub.s32 0, %v256
        %v258 = vrot.slane %v237, %v257
        %vm259 = vcmp.eq.s32.totalorder %v239, %v258
        %vm260 = vcmp.eq.s32.totalorder %v240, %v258
        %vm261 = vcmp.eq.s32.totalorder %v241, %v258
        %vm262 = vcmp.eq.s32.totalorder %v242, %v258
        %vm263 = vcmp.eq.s32.totalorder %v243, %v258
        %vm264 = vcmp.eq.s32.totalorder %v244, %v258
        %vm265 = vcmp.eq.s32.totalorder %v245, %v258
        %vm266 = vcmp.eq.s32.totalorder %v246, %v258
        %vm267 = vcmp.eq.s32.totalorder %v247, %v258
        %vm268 = vcmp.eq.s32.totalorder %v248, %v258
        %vm269 = vcmp.eq.s32.totalorder %v249, %v258
        %vm270 = vcmp.eq.s32.totalorder %v250, %v258
        %vm271 = vcmp.eq.s32.totalorder %v251, %v258
        %vm272 = vcmp.eq.s32.totalorder %v252, %v258
        %vm273 = vcmp.eq.s32.totalorder %v253, %v258
        %vm274 = vcmp.eq.s32.totalorder %v254, %v258
        %v275 = vsel %vm259, 1, 0
        %v276 = vsel %vm260, 1, 0
        %v277 = vsel %vm261, 1, 0
        %v278 = vsel %vm262, 1, 0
        %v279 = vsel %vm263, 1, 0
        %v280 = vsel %vm264, 1, 0
        %v281 = vsel %vm265, 1, 0
        %v282 = vsel %vm266, 1, 0
        %v283 = vsel %vm267, 1, 0
        %v284 = vsel %vm268, 1, 0
        %v285 = vsel %vm269, 1, 0
        %v286 = vsel %vm270, 1, 0
        %v287 = vsel %vm271, 1, 0
        %v288 = vsel %vm272, 1, 0
        %v289 = vsel %vm273, 1, 0
        %v290 = vsel %vm274, 1, 0
        %v291 = vcvt.s32.f32 %v275
        %v292 = vcvt.s32.f32 %v276
        %v293 = vcvt.s32.f32 %v277
        %v294 = vcvt.s32.f32 %v278
        %v295 = vcvt.s32.f32 %v279
        %v296 = vcvt.s32.f32 %v280
        %v297 = vcvt.s32.f32 %v281
        %v298 = vcvt.s32.f32 %v282
        %v299 = vcvt.s32.f32 %v283
        %v300 = vcvt.s32.f32 %v284
        %v301 = vcvt.s32.f32 %v285
        %v302 = vcvt.s32.f32 %v286
        %v303 = vcvt.s32.f32 %v287
        %v304 = vcvt.s32.f32 %v288
        %v305 = vcvt.s32.f32 %v289
        %v306 = vcvt.s32.f32 %v290
        %307 = vmatprep.subr.mxu0 0.0
        %308 = vmatpush1.msra.mxu0 %v291
        %309 = vmatprep.subr.mxu0 0.0
        %310 = vmatpush1.msra.mxu0 %v292
        %311 = vmatprep.subr.mxu0 0.0
        %312 = vmatpush1.msra.mxu0 %v293
        %313 = vmatprep.subr.mxu0 0.0
        %314 = vmatpush1.msra.mxu0 %v294
        %315 = vmatprep.subr.mxu0 0.0
        %316 = vmatpush1.msra.mxu0 %v295
        %317 = vmatprep.subr.mxu0 0.0
        %318 = vmatpush1.msra.mxu0 %v296
        %319 = vmatprep.subr.mxu0 0.0
        %320 = vmatpush1.msra.mxu0 %v297
        %321 = vmatprep.subr.mxu0 0.0
        %322 = vmatpush1.msra.mxu0 %v298
        %323 = vmatprep.subr.mxu0 0.0
        %324 = vmatpush1.msra.mxu0 %v299
        %325 = vmatprep.subr.mxu0 0.0
        %326 = vmatpush1.msra.mxu0 %v300
        %327 = vmatprep.subr.mxu0 0.0
        %328 = vmatpush1.msra.mxu0 %v301
        %329 = vmatprep.subr.mxu0 0.0
        %330 = vmatpush1.msra.mxu0 %v302
        %331 = vmatprep.subr.mxu0 0.0
        %332 = vmatpush1.msra.mxu0 %v303
        %333 = vmatprep.subr.mxu0 0.0
        %334 = vmatpush1.msra.mxu0 %v304
        %335 = vmatprep.subr.mxu0 0.0
        %336 = vmatpush1.msra.mxu0 %v305
        %337 = vmatprep.subr.mxu0 0.0
        %338 = vmatpush1.msra.mxu0 %v306
        %339 = vmatprep.subr.mxu0 0.0
        %340 = vmatpush1.msra.mxu0 0.0
        %341 = vmatprep.subr.mxu0 0.0
        %342 = vmatpush1.msra.mxu0 0.0
        %343 = vmatprep.subr.mxu0 0.0
        %344 = vmatpush1.msra.mxu0 0.0
        %345 = vmatprep.subr.mxu0 0.0
        %346 = vmatpush1.msra.mxu0 0.0
        %347 = vmatprep.subr.mxu0 0.0
        %348 = vmatpush1.msra.mxu0 0.0
        %349 = vmatprep.subr.mxu0 0.0
        %350 = vmatpush1.msra.mxu0 0.0
        %351 = vmatprep.subr.mxu0 0.0
        %352 = vmatpush1.msra.mxu0 0.0
        %353 = vmatprep.subr.mxu0 0.0
        %354 = vmatpush1.msra.mxu0 0.0
        %355 = vmatprep.subr.mxu0 0.0
        %356 = vmatpush1.msra.mxu0 0.0
        %357 = vmatprep.subr.mxu0 0.0
        %358 = vmatpush1.msra.mxu0 0.0
        %359 = vmatprep.subr.mxu0 0.0
        %360 = vmatpush1.msra.mxu0 0.0
        %361 = vmatprep.subr.mxu0 0.0
        %362 = vmatpush1.msra.mxu0 0.0
        %363 = vmatprep.subr.mxu0 0.0
        %364 = vmatpush1.msra.mxu0 0.0
        %365 = vmatprep.subr.mxu0 0.0
        %366 = vmatpush1.msra.mxu0 0.0
        %367 = vmatprep.subr.mxu0 0.0
        %368 = vmatpush1.msra.mxu0 0.0
        %369 = vmatprep.subr.mxu0 0.0
        %370 = vmatpush1.msra.mxu0 0.0
        %371 = vmatprep.mubr.f32.mxu0 0.0
        %372 = vmatmul.mubr.f32.gmra.mrb[0].mxu0 %v235
        %v373 = vpop.f32.mrb[0].mxu0
        %v374 = vadd.f32 0.0, %v373
        %v375 = vpop.f32.mrb[0].mxu0
        %376 = vdwg.mxu0
        %v377 = vsub.f32 %v374, %v236
        %v378 = vand.u32 2147483647, %v377
        %vm379 = vcmask 1041408
        %v380 = vsel %vm379, %v378, 0.0
        %381 = vadd.xlane.f32.xlu0 %v380
        %v382 = vpop.xlane.xlu0 %381
        %v383 = vrot.slane %v382, 4
        %v384 = vadd.f32 %v382, %v383
        %v385 = vrot.slane %v384, 2
        %v386 = vadd.f32 %v384, %v385
        %v387 = vrot.slane %v386, 1
        %v388 = vadd.f32 %v386, %v387
        %s389 = vtos %v388
        %v390 = vstv %s389
        %vm391 = vcmask 0
        %392 = vst.msk [vmem:[%s234] sm:$0x1] %vm391, %v390
        %p393 = scmp.lt.s32.totalorder %s20, 1
        %s394 = scalar_select %p393, %s20, 1
        %s395 = scalar_lea.vmem %s3, %s394
        // Predicated region
        $region41: #{tpu_custom_call.1} parent=31 // pred_check
          %p396 = pneg %p116
        $region42: #{tpu_custom_call.1} parent=31 // pred_check_branch
          %398 = sbr.rel (%p396) target = $region44
        $region43: #{tpu_custom_call.1} parent=31 // pred_region
          _
        $region44: #{tpu_custom_call.1} parent=31 // pred_fallthru
          _
      $region32: #{tpu_custom_call.1} parent=5 // pred_fallthru
        _
      %p399 = scmp.le.s32.totalorder 2, %s15
      // Predicated region
      $region45: #{tpu_custom_call.1} parent=5 // pred_check
        %p400 = pneg %p399
      $region46: #{tpu_custom_call.1} parent=5 // pred_check_branch
        %402 = sbr.rel (%p400) target = $region48
      $region47: #{tpu_custom_call.1} parent=5 // pred_region
        %s403 = ssub.s32 %s15, 2
        // Predicated region
        $region49: #{tpu_custom_call.1} parent=47 // pred_check
          %p404 = pneg %p122
        $region50: #{tpu_custom_call.1} parent=47 // pred_check_branch
          %406 = sbr.rel (%p404) target = $region52
        $region51: #{tpu_custom_call.1} parent=47 // pred_region
          %p407 = scmp.lt.s32.totalorder %s21, 1
          %s408 = scalar_select %p407, %s21, 1
          %s409 = scalar_lea.vmem %s3, %s408
        $region52: #{tpu_custom_call.1} parent=47 // pred_fallthru
          _
      $region48: #{tpu_custom_call.1} parent=5 // pred_fallthru
        _
    $region6: #{tpu_custom_call.1} parent=1 // loop_footer
      %s19 = sadd.s32 1, %s15
    $region7: #{tpu_custom_call.1} parent=1 // loop_footer_branch
      %14 = sbr.rel target = $region3
    $region8: #{tpu_custom_call.1} parent=1 // loop_exit
      _
    %410 = vsyncpa [#allocation3], 1
    %s411 = scalar_lea.sflag [#allocation3], 1
    %412 = vsyncpa %s411, 1
    %413 = vsyncpa [#allocation5], 1
    %s414 = scalar_lea.sflag [#allocation5], 1
    %415 = vsyncpa %s414, 1

</llo_original>
